<compile_context>
chip_gen: v5e
topology: v5e:2x2
jax: 0.10.0
libtpu: 0.0.40
codegen_flags: <defaults>
</compile_context>

<pallas_src>
import functools

import jax
import jax.numpy as jnp
from jax.experimental import pallas as pl
from jax.experimental.pallas import tpu as pltpu

_LANE_CHOICES = (1024, 512, 256, 128)     # lane-dense slab widths (multiples of 128)
_SUBLANE_PACK = {4: 8, 2: 16, 1: 32}      # itemsize -> sublane packing granularity


@functools.lru_cache(maxsize=1)
def _generation_params():
    """(target_block_bytes, vmem_limit_bytes) tuned per TPU generation."""
    kind = ""
    try:
        kind = jax.devices()[0].device_kind.lower()
    except Exception:  # pragma: no cover - defensive; fall back to safe defaults
        pass
    if "v7" in kind:
        # ~3.2 TB/s HBM, 64 MiB VMEM/TC: big blocks amortize per-step overhead.
        return 8 << 20, 48 << 20
    if "v6" in kind:
        # 128 MiB VMEM, ~1.4 TB/s: 4 MiB blocks sit on the flat part of the curve.
        return 4 << 20, 40 << 20
    # v5e (and unknown): 2 MiB blocks are already ~95% efficient at ~0.8 TB/s and
    # stay well inside scoped VMEM even before the raised limit.
    return 2 << 20, 24 << 20


def _spike_kernel(x_ref, o_ref):
    # heaviside spike: 1.0 where x >= 0 else 0.0 (computed in the input dtype)
    o_ref[...] = (x_ref[...] >= 0).astype(o_ref.dtype)


def _sigmoid_kernel(alpha_ref, x_ref, o_ref):
    # primitive (smooth) surrogate: sigmoid(alpha * x) via a single tanh EUP push
    alpha = alpha_ref[0]
    xf = x_ref[...].astype(jnp.float32)
    o_ref[...] = (0.5 * (jnp.tanh(0.5 * alpha * xf) + 1.0)).astype(o_ref.dtype)


def _jnp_fallback(x_flat, alpha, spiking, dtype):
    """Plain-jnp path for tiny tensors / the <128-element tail."""
    if spiking:
        return (x_flat >= 0).astype(dtype)
    a = jnp.asarray(alpha, jnp.float32)
    return jax.nn.sigmoid(a * x_flat.astype(jnp.float32)).astype(dtype)


def surrogate_forward(x, alpha, spiking=True):
    """Forward pass of SurrogateFunctionBase as a Pallas TPU kernel."""
    orig_shape = x.shape
    dtype = x.dtype
    n = x.size
    if n == 0:
        return x

    # Pick the widest lane-dense slab width that divides the element count.
    lanes = None
    for cand in _LANE_CHOICES:
        if n % cand == 0:
            lanes = cand
            break
    if lanes is None:
        lanes = 128
    n_main = (n // lanes) * lanes      # kernel-processed prefix
    tail = n - n_main                  # < 128 elements, handled with plain jnp

    xf = x.reshape(-1)
    if n_main == 0:
        # Tiny tensor (< 128 elements): launch overhead dominates; plain jnp.
        return _jnp_fallback(xf, alpha, spiking, dtype).reshape(orig_shape)

    rows = n_main // lanes
    x_main = (xf[:n_main] if tail else xf).reshape(rows, lanes)

    itemsize = x.dtype.itemsize
    sub = _SUBLANE_PACK.get(itemsize, 8)
    target_block_bytes, vmem_limit = _generation_params()
    max_rows = max(sub, (target_block_bytes // (lanes * itemsize)) // sub * sub)

    if rows > max_rows:
        block_rows = max_rows
    elif rows >= 2 * sub:
        # Whole tensor fits in one block: split into (at least) 2 parallel grid
        # steps so both TensorCores on v7x get work (neutral on v5e/v6e).
        half = (rows + 1) // 2
        block_rows = ((half + sub - 1) // sub) * sub
    else:
        block_rows = rows  # full row extent (satisfies the (8,128) rule)

    grid = (pl.cdiv(rows, block_rows),)  # ragged last block handled by the pipeline

    bytes_accessed = 2 * n_main * itemsize
    if spiking:
        cost = pl.CostEstimate(flops=n_main, transcendentals=0,
                               bytes_accessed=bytes_accessed)
    else:
        cost = pl.CostEstimate(flops=3 * n_main, transcendentals=n_main,
                               bytes_accessed=bytes_accessed)

    cparams = pltpu.CompilerParams(
        dimension_semantics=("parallel",),
        vmem_limit_bytes=vmem_limit,
    )
    out_shape = jax.ShapeDtypeStruct((rows, lanes), dtype)

    if spiking:
        # alpha unused -> no scalar prefetch, no alpha transfer at all.
        out_main = pl.pallas_call(
            _spike_kernel,
            out_shape=out_shape,
            grid=grid,
            in_specs=[pl.BlockSpec((block_rows, lanes), lambda i: (i, 0))],
            out_specs=pl.BlockSpec((block_rows, lanes), lambda i: (i, 0)),
            compiler_params=cparams,
            cost_estimate=cost,
        )(x_main)
    else:
        alpha_arr = jnp.asarray(alpha, dtype=jnp.float32).reshape((1,))
        out_main = pl.pallas_call(
            _sigmoid_kernel,
            out_shape=out_shape,
            grid_spec=pltpu.PrefetchScalarGridSpec(
                num_scalar_prefetch=1,   # alpha lives in SMEM; no recompile per alpha
                grid=grid,
                in_specs=[pl.BlockSpec((block_rows, lanes), lambda i, a: (i, 0))],
                out_specs=pl.BlockSpec((block_rows, lanes), lambda i, a: (i, 0)),
            ),
            compiler_params=cparams,
            cost_estimate=cost,
        )(alpha_arr, x_main)

    if tail:
        out_tail = _jnp_fallback(xf[n_main:], alpha, spiking, dtype)
        out = jnp.concatenate([out_main.reshape(-1), out_tail]).reshape(orig_shape)
    else:
        out = out_main.reshape(orig_shape)
    return out


class SurrogateFunctionBase:
    """JAX/Pallas mirror of the PyTorch SurrogateFunctionBase module."""

    def __init__(self, alpha, spiking=True):
        self.alpha = alpha
        self.spiking = spiking

    def set_spiking_mode(self, spiking: bool):
        self.spiking = spiking

    def extra_repr(self):
        return f"alpha={self.alpha}, spiking={self.spiking}"

    def __call__(self, x):
        return surrogate_forward(x, self.alpha, self.spiking)


if __name__ == "__main__":
    key = jax.random.PRNGKey(0)
    alpha = 2.0

    # NCHW input, small shape: batch=2, channels=4, spatial=16x16 (divisible path)
    x = jax.random.normal(key, (2, 4, 16, 16), dtype=jnp.float32)

    mod = SurrogateFunctionBase(alpha, spiking=True)
    y_spike = jax.block_until_ready(mod(x))

    mod.set_spiking_mode(False)
    y_prim = jax.block_until_ready(mod(x))

    ref_spike = (x >= 0.0).astype(x.dtype)
    ref_prim = jax.nn.sigmoid(alpha * x)
    assert y_spike.shape == x.shape and y_prim.shape == x.shape
    assert jnp.allclose(y_spike, ref_spike)
    assert jnp.allclose(y_prim, ref_prim, atol=5e-5)

    # bf16 input (dtype handled inside the kernel, no wrapper casts)
    xb = jax.random.normal(jax.random.PRNGKey(1), (2, 4, 16, 16), dtype=jnp.bfloat16)
    yb = jax.block_until_ready(surrogate_forward(xb, alpha, spiking=False))
    assert yb.dtype == jnp.bfloat16
    assert jnp.allclose(yb.astype(jnp.float32),
                        jax.nn.sigmoid(alpha * xb.astype(jnp.float32)),
                        atol=2e-2)

    # Odd shape: kernel runs on the 128-divisible prefix, jnp handles the tiny tail
    xo = jax.random.normal(jax.random.PRNGKey(2), (3, 5, 7, 11), dtype=jnp.float32)
    yo = jax.block_until_ready(surrogate_forward(xo, alpha, spiking=True))
    assert jnp.allclose(yo, (xo >= 0.0).astype(xo.dtype))

    # Moderate shape exercising the >=2-step parallel grid (megacore split path)
    xm = jax.random.normal(jax.random.PRNGKey(3), (8, 4, 64, 64), dtype=jnp.float32)
    ym = jax.block_until_ready(surrogate_forward(xm, alpha, spiking=False))
    assert jnp.allclose(ym, jax.nn.sigmoid(alpha * xm), atol=5e-5)

    print("KERNEL_OK")
</pallas_src>

<mosaic_0001>
module attributes {stable_mosaic.version = 11 : i64} {
  func.func @_spike_kernel(%arg0: i32, %arg1: memref<2x1024xf32, #tpu.memory_space<vmem>>, %arg2: memref<2x1024xf32, #tpu.memory_space<vmem>>) attributes {dimension_semantics = [#tpu.dimension_semantics<parallel>], iteration_bounds = array<i64: 1>, scalar_prefetch = 0 : i64, scratch_operands = 0 : i64, tpu.core_type = #tpu.core_type<tc>, window_params = [{transform_indices = @transform_0, window_bounds = array<i64: 2, 1024>}, {transform_indices = @transform_1, window_bounds = array<i64: 2, 1024>}]} {
    %c0 = arith.constant 0 : index
    %c0_0 = arith.constant 0 : index
    %0 = vector.load %arg1[%c0, %c0_0] : memref<2x1024xf32, #tpu.memory_space<vmem>>, vector<2x1024xf32>
    %cst = arith.constant 0.000000e+00 : f32
    %1 = vector.broadcast %cst : f32 to vector<2x1024xf32>
    %2 = arith.cmpf oge, %0, %1 : vector<2x1024xf32>
    %3 = arith.extui %2 : vector<2x1024xi1> to vector<2x1024xi32>
    %4 = arith.sitofp %3 : vector<2x1024xi32> to vector<2x1024xf32>
    %c0_1 = arith.constant 0 : index
    %c0_2 = arith.constant 0 : index
    %5 = vector.load %arg2[%c0_1, %c0_2] : memref<2x1024xf32, #tpu.memory_space<vmem>>, vector<2x1024xf32>
    tpu.vector_store %arg2[%c0_1, %c0_2], %4 {strides = array<i32>} : memref<2x1024xf32, #tpu.memory_space<vmem>>, vector<2x1024xf32>,
    return
  }
  func.func @transform_0(%arg0: i32) -> (i32, i32) {
    %c0_i32 = arith.constant 0 : i32
    %c0_i32_0 = arith.constant 0 : i32
    return %arg0, %c0_i32 : i32, i32
  }
  func.func @transform_1(%arg0: i32) -> (i32, i32) {
    %c0_i32 = arith.constant 0 : i32
    %c0_i32_0 = arith.constant 0 : i32
    return %arg0, %c0_i32 : i32, i32
  }
}

</mosaic_0001>

<llo_original>
// kernel: tpu_custom_call.1
$region0: #{tpu_custom_call.1}
  #allocation0 [shape = 'u32[]', space=smem, size = 0x4, offset = 0x4, fixed_abs, tag = 'smem constant byte address 0x4 - core index']
  #allocation1 [shape = 'u32[72,128]{1,0:T(1,128)}', space=vmem, size = 0x9000, scoped, tag = 'internal scratch']
  %s0 = inlined_call_operand.hbm [shape: f32[2,1024], index: 0, kind: input, shape index: {}]
  %s1 = inlined_call_operand.hbm [shape: f32[2,1024], index: 1, kind: output, shape index: {}]
  %s2 = sld [smem:[#allocation0]]
  $region18: #{tpu_custom_call.1} parent=0
    _
  %s4 = ssub.s32 1, %s2
  %s5 = scalar_select 0, %s4, %s2
  $region1: #{tpu_custom_call.1} parent=0
    #allocation2 [shape = 'u8[8192]{0}', space=vmem, size = 0x2000, scoped, tag = 'input window, operand 0, single buffered']
    #allocation3 [shape = 's32[1]{0}', space=sflag, size = 0x4, scoped, tag = 'scoped memory for tpu_custom_call.1']
    #allocation4 [shape = 's32[1]{0}', space=sflag, size = 0x4, scoped, tag = 'scoped memory for tpu_custom_call.1']
    #allocation5 [shape = 'u8[8192]{0}', space=vmem, size = 0x2000, scoped, tag = 'output window, operand 0, single buffered']
    %6 = vsyncpa [#allocation3], 0
    %7 = vsyncpa [#allocation4], 0
    // Predicated region
    $region2: #{tpu_custom_call.1} parent=1 // pred_check
      _
    $region3: #{tpu_custom_call.1} parent=1 // pred_check_branch
      %9 = sbr.rel (0) target = $region5
    $region4: #{tpu_custom_call.1} parent=1 // pred_region
      %11 = vsyncadd [#allocation3], 0
      %s13 = sshll.u32 %s0, 4
      %s14 = int_to_ptr.hbm [resolvable:$true] %s13
      %s15 = sshll.u32 [#allocation2], 4
      %s16 = int_to_ptr.vmem [resolvable:$true] %s15
      %18 = dma.hbm_to_vmem [thread:$0]  %s14, 256, %s16, [#allocation3]
    $region5: #{tpu_custom_call.1} parent=1 // pred_fallthru
      _
    // Predicated region
    $region6: #{tpu_custom_call.1} parent=1 // pred_check
      _
    $region7: #{tpu_custom_call.1} parent=1 // pred_check_branch
      %20 = sbr.rel (0) target = $region9
    $region8: #{tpu_custom_call.1} parent=1 // pred_region
      %22 = dma.done [#allocation3], 256
    $region9: #{tpu_custom_call.1} parent=1 // pred_fallthru
      _
    %v23 = vld [vmem:[#allocation2] sm:$0xff]
    %v24 = vld [vmem:[#allocation2 + $0x8] sm:$0xff]
    %vm25 = vcmp.ge.f32.partialorder %v23, 0.0
    %vm26 = vcmp.ge.f32.partialorder %v24, 0.0
    %v27 = vsel %vm25, 1, 0
    %v28 = vsel %vm26, 1, 0
    %v29 = vcvt.s32.f32 %v27
    %v30 = vcvt.s32.f32 %v28
    %31 = vst [vmem:[#allocation5] sm:$0xff] %v29
    %32 = vst [vmem:[#allocation5 + $0x8] sm:$0xff] %v30
    // Predicated region
    $region10: #{tpu_custom_call.1} parent=1 // pred_check
      _
    $region11: #{tpu_custom_call.1} parent=1 // pred_check_branch
      %34 = sbr.rel (0) target = $region13
    $region12: #{tpu_custom_call.1} parent=1 // pred_region
      %36 = vsyncadd [#allocation4], 0
      %s38 = sshll.u32 [#allocation5], 4
      %s39 = int_to_ptr.vmem [resolvable:$true] %s38
      %s40 = sshll.u32 %s1, 4
      %s41 = int_to_ptr.hbm [resolvable:$true] %s40
      %43 = dma.vmem_to_hbm [thread:$0]  %s39, 256, %s41, [#allocation4]
    $region13: #{tpu_custom_call.1} parent=1 // pred_fallthru
      _
    // Predicated region
    $region14: #{tpu_custom_call.1} parent=1 // pred_check
      _
    $region15: #{tpu_custom_call.1} parent=1 // pred_check_branch
      %45 = sbr.rel (0) target = $region17
    $region16: #{tpu_custom_call.1} parent=1 // pred_region
      %47 = dma.done [#allocation4], 256
    $region17: #{tpu_custom_call.1} parent=1 // pred_fallthru
      _
    %48 = vsyncpa [#allocation3], 1
    %49 = vsyncpa [#allocation4], 1

</llo_original>
